<compile_context>
chip_gen: v6e
topology: v6e:2x2x1
jax: 0.10.0
libtpu: 0.0.40
codegen_flags: <defaults>
</compile_context>

<pallas_src>
import functools

import jax
import jax.numpy as jnp
from jax.experimental import pallas as pl
from jax.experimental.pallas import tpu as pltpu

_LANE = 128          # vreg lane width (last dim)
_BF16_SUBLANE = 16   # packed sublane rows for bf16 tiles


def _round_up(n, m):
    return (n + m - 1) // m * m


def _cdiv(a, b):
    return (a + b - 1) // b


def _pad2d(a, rows, cols):
    r, c = a.shape
    return jnp.pad(a, ((0, rows - r), (0, cols - c)))


# --------------------------------------------------------------------------- #
# Kernel
# --------------------------------------------------------------------------- #
def _battlenet_kernel(x_ref, w1_ref, b1_ref, w2_ref, b2_ref,
                      w3_ref, b3_ref, w4_ref, b4_ref, o_ref):
    """Fused 4-layer MLP.  bf16 MXU matmuls, f32 accumulate + bias + ReLU."""
    # bf16 cast happens here (not in the wrapper): x arrives as unpadded f32.
    x = x_ref[...].astype(jnp.bfloat16)

    h = jnp.dot(x, w1_ref[...], preferred_element_type=jnp.float32)
    h = jnp.maximum(h + b1_ref[...], 0.0).astype(jnp.bfloat16)

    h = jnp.dot(h, w2_ref[...], preferred_element_type=jnp.float32)
    h = jnp.maximum(h + b2_ref[...], 0.0).astype(jnp.bfloat16)

    h = jnp.dot(h, w3_ref[...], preferred_element_type=jnp.float32)
    h = jnp.maximum(h + b3_ref[...], 0.0).astype(jnp.bfloat16)

    out = jnp.dot(h, w4_ref[...], preferred_element_type=jnp.float32) + b4_ref[...]
    o_ref[...] = out.astype(o_ref.dtype)


# --------------------------------------------------------------------------- #
# One-time parameter preparation (pad + cast ONCE, reuse across forward calls)
# --------------------------------------------------------------------------- #
def prepare_params(params):
    """Pad hidden/output dims to 128-lane multiples, cast weights to bf16.

    w1's *rows* (input_size) stay unpadded so the kernel can consume the raw,
    unpadded f32 x directly.  Zero padding is exact: padded hidden columns get
    zero weights+bias (ReLU(0)=0) and meet zero weight rows in the next layer;
    padded output columns are sliced off after the kernel.

    Returns (prepped_arrays_tuple, output_size).
    """
    (w1, b1), (w2, b2), (w3, b3), (w4, b4) = params
    input_size, hidden = w1.shape
    output_size = w4.shape[1]
    hid_p = _round_up(hidden, _LANE)
    out_p = _round_up(output_size, _LANE)

    def bias(b, n):
        return _pad2d(b.reshape(1, -1).astype(jnp.float32), 1, n)

    prepped = (
        _pad2d(w1, input_size, hid_p).astype(jnp.bfloat16), bias(b1, hid_p),
        _pad2d(w2, hid_p, hid_p).astype(jnp.bfloat16),      bias(b2, hid_p),
        _pad2d(w3, hid_p, hid_p).astype(jnp.bfloat16),      bias(b3, hid_p),
        _pad2d(w4, hid_p, out_p).astype(jnp.bfloat16),      bias(b4, out_p),
    )
    return prepped, output_size


# --------------------------------------------------------------------------- #
# Forward
# --------------------------------------------------------------------------- #
@functools.partial(jax.jit,
                   static_argnames=("output_size", "tile_b", "out_dtype"))
def battlenet_forward(x, prepped, output_size, tile_b=1024,
                      out_dtype=jnp.float32):
    """BattleNet.forward(x) using the fused Pallas kernel.

    x:        (batch, input_size) float32, unpadded.
    prepped:  output of prepare_params().
    tile_b:   max rows per grid step (default 1024 on all generations).
    """
    w1p, b1p, w2p, b2p, w3p, b3p, w4p, b4p = prepped
    batch, input_size = x.shape
    hid_p = w1p.shape[1]
    out_p = w4p.shape[1]
    out_itemsize = jnp.dtype(out_dtype).itemsize

    # ---- balanced batch tiling -------------------------------------------
    # At least 2 grid steps whenever the batch spans >= 2 tiles so both v7x
    # TensorCores get work ("parallel" axis); harmless on single-TC v5e/v6e.
    min_steps = 2 if batch >= 2 * _BF16_SUBLANE else 1
    steps = max(_cdiv(batch, tile_b), min_steps)
    tile = _round_up(_cdiv(batch, steps), _BF16_SUBLANE)
    batch_p = steps * tile

    # Only a tiny row pad of the f32 input (< 16 rows per step); no column
    # pad, no dtype cast in the wrapper.
    xp = x if batch_p == batch else jnp.pad(x, ((0, batch_p - batch), (0, 0)))

    # ---- weight residency / VMEM budget -----------------------------------
    weight_bytes = 2 * (input_size * hid_p + 2 * hid_p * hid_p + hid_p * out_p)
    bias_bytes = 4 * (3 * hid_p + out_p)
    # Constant-index weights don't benefit from double-buffering; single-buffer
    # them once they are big enough to threaten v7x's 64 MiB VMEM.
    weight_bufs = 1 if weight_bytes > (8 << 20) else 2
    io_bytes = 2 * (tile * input_size * 4 + tile * out_p * out_itemsize)
    act_bytes = 3 * tile * hid_p * 4
    need = weight_bufs * (weight_bytes + bias_bytes) + io_bytes + act_bytes
    vmem_bytes = int(min(max(need + (8 << 20), 32 << 20), 48 << 20))

    def rep(shape):  # replicated weight/bias: same block every grid step
        if weight_bufs == 1:
            return pl.BlockSpec(shape, lambda i: (0, 0),
                                pipeline_mode=pl.Buffered(1))
        return pl.BlockSpec(shape, lambda i: (0, 0))

    flops = 2 * batch_p * (input_size * hid_p + 2 * hid_p * hid_p
                           + hid_p * out_p)
    bytes_accessed = (batch_p * input_size * 4 + weight_bytes + bias_bytes
                      + batch_p * out_p * out_itemsize)
    cost = pl.CostEstimate(flops=int(flops), transcendentals=0,
                           bytes_accessed=int(bytes_accessed))

    out_pad = pl.pallas_call(
        _battlenet_kernel,
        out_shape=jax.ShapeDtypeStruct((batch_p, out_p), out_dtype),
        grid=(steps,),
        in_specs=[
            # Unpadded f32 x tile: last dim == full array dim (legal block).
            pl.BlockSpec((tile, input_size), lambda i: (i, 0)),
            rep((input_size, hid_p)), rep((1, hid_p)),   # layer 1
            rep((hid_p, hid_p)),      rep((1, hid_p)),   # layer 2
            rep((hid_p, hid_p)),      rep((1, hid_p)),   # layer 3
            rep((hid_p, out_p)),      rep((1, out_p)),   # layer 4
        ],
        out_specs=pl.BlockSpec((tile, out_p), lambda i: (i, 0)),
        compiler_params=pltpu.CompilerParams(
            dimension_semantics=("parallel",),   # megacore split on v7x
            vmem_limit_bytes=vmem_bytes),
        cost_estimate=cost,
    )(xp, w1p, b1p, w2p, b2p, w3p, b3p, w4p, b4p)

    return out_pad[:batch, :output_size]


# --------------------------------------------------------------------------- #
# Init + pure-JAX reference
# --------------------------------------------------------------------------- #
def init_params(key, input_size, hidden_size, output_size):
    """Deterministic init matching nn.Linear shapes (uniform +/- 1/sqrt(fan_in))."""
    dims = [(input_size, hidden_size), (hidden_size, hidden_size),
            (hidden_size, hidden_size), (hidden_size, output_size)]
    params = []
    for fan_in, fan_out in dims:
        key, kw, kb = jax.random.split(key, 3)
        bound = 1.0 / float(fan_in) ** 0.5
        w = jax.random.uniform(kw, (fan_in, fan_out), jnp.float32, -bound, bound)
        b = jax.random.uniform(kb, (fan_out,), jnp.float32, -bound, bound)
        params.append((w, b))
    return params


def reference_forward(x, params, mirror_bf16=False):
    """Pure-JAX BattleNet.forward.  mirror_bf16=True reproduces the kernel's
    bf16-operand / f32-accumulate numerics for a tight comparison."""
    cast = (lambda a: a.astype(jnp.bfloat16).astype(jnp.float32)) if mirror_bf16 \
        else (lambda a: a)
    h = cast(x)
    for i, (w, b) in enumerate(params):
        h = h @ cast(w) + b
        if i < 3:
            h = cast(jnp.maximum(h, 0.0))
    return h


# --------------------------------------------------------------------------- #
if __name__ == "__main__":
    input_size, hidden_size, output_size = 16, 32, 8

    key = jax.random.PRNGKey(0)
    key, kx1, kx2 = jax.random.split(key, 3)
    params = init_params(key, input_size, hidden_size, output_size)
    prepped, out_dim = prepare_params(params)   # pad + cast weights ONCE

    # Case 1: tiny batch (8 rows) -> single grid step, 16-row tile.
    x1 = jax.random.normal(kx1, (8, input_size), dtype=jnp.float32)
    out1 = jax.block_until_ready(
        battlenet_forward(x1, prepped, output_size=out_dim))
    assert out1.shape == (8, output_size)
    assert jnp.allclose(out1, reference_forward(x1, params, mirror_bf16=True),
                        atol=1e-3, rtol=1e-3), "mismatch vs bf16-mirrored reference"
    assert jnp.allclose(out1, reference_forward(x1, params),
                        atol=5e-2, rtol=5e-2), "mismatch vs f32 reference"

    # Case 2: non-divisible batch (300 rows), small tile_b to exercise the
    # balanced multi-step "parallel" grid (4 steps of 80 rows, pad 300->320).
    x2 = jax.random.normal(kx2, (300, input_size), dtype=jnp.float32)
    out2 = jax.block_until_ready(
        battlenet_forward(x2, prepped, output_size=out_dim, tile_b=96))
    assert out2.shape == (300, output_size)
    assert jnp.allclose(out2, reference_forward(x2, params, mirror_bf16=True),
                        atol=1e-3, rtol=1e-3), "mismatch vs bf16-mirrored reference"
    assert jnp.allclose(out2, reference_forward(x2, params),
                        atol=5e-2, rtol=5e-2), "mismatch vs f32 reference"

    print("KERNEL_OK")
</pallas_src>

<mosaic_0001>
module attributes {stable_mosaic.version = 11 : i64} {
  func.func @_battlenet_kernel(%arg0: i32, %arg1: memref<16x16xf32, #tpu.memory_space<vmem>>, %arg2: memref<16x128xbf16, #tpu.memory_space<vmem>>, %arg3: memref<1x128xf32, #tpu.memory_space<vmem>>, %arg4: memref<128x128xbf16, #tpu.memory_space<vmem>>, %arg5: memref<1x128xf32, #tpu.memory_space<vmem>>, %arg6: memref<128x128xbf16, #tpu.memory_space<vmem>>, %arg7: memref<1x128xf32, #tpu.memory_space<vmem>>, %arg8: memref<128x128xbf16, #tpu.memory_space<vmem>>, %arg9: memref<1x128xf32, #tpu.memory_space<vmem>>, %arg10: memref<16x128xf32, #tpu.memory_space<vmem>>) attributes {dimension_semantics = [#tpu.dimension_semantics<parallel>], iteration_bounds = array<i64: 1>, scalar_prefetch = 0 : i64, scratch_operands = 0 : i64, tpu.core_type = #tpu.core_type<tc>, window_params = [{transform_indices = @transform_0, window_bounds = array<i64: 16, 16>}, {pipeline_mode = #tpu.pipeline_mode<synchronous>, transform_indices = @transform_1, window_bounds = array<i64: 16, 128>}, {pipeline_mode = #tpu.pipeline_mode<synchronous>, transform_indices = @transform_2, window_bounds = array<i64: 1, 128>}, {pipeline_mode = #tpu.pipeline_mode<synchronous>, transform_indices = @transform_3, window_bounds = array<i64: 128, 128>}, {pipeline_mode = #tpu.pipeline_mode<synchronous>, transform_indices = @transform_4, window_bounds = array<i64: 1, 128>}, {pipeline_mode = #tpu.pipeline_mode<synchronous>, transform_indices = @transform_5, window_bounds = array<i64: 128, 128>}, {pipeline_mode = #tpu.pipeline_mode<synchronous>, transform_indices = @transform_6, window_bounds = array<i64: 1, 128>}, {pipeline_mode = #tpu.pipeline_mode<synchronous>, transform_indices = @transform_7, window_bounds = array<i64: 128, 128>}, {pipeline_mode = #tpu.pipeline_mode<synchronous>, transform_indices = @transform_8, window_bounds = array<i64: 1, 128>}, {transform_indices = @transform_9, window_bounds = array<i64: 16, 128>}]} {
    %c0 = arith.constant 0 : index
    %c0_0 = arith.constant 0 : index
    %0 = vector.load %arg1[%c0, %c0_0] : memref<16x16xf32, #tpu.memory_space<vmem>>, vector<16x16xf32>
    %1 = arith.truncf %0 : vector<16x16xf32> to vector<16x16xbf16>
    %c0_1 = arith.constant 0 : index
    %c0_2 = arith.constant 0 : index
    %2 = vector.load %arg2[%c0_1, %c0_2] : memref<16x128xbf16, #tpu.memory_space<vmem>>, vector<16x128xbf16>
    %cst = arith.constant dense<0.000000e+00> : vector<16x128xf32>
    %3 = tpu.matmul %1, %2, %cst {dimension_numbers = #tpu.dot_dimension_numbers<[1], [0], [0], [1], [0, 0, 1, 1], [], []>} : vector<16x16xbf16>, vector<16x128xbf16>, vector<16x128xf32> -> vector<16x128xf32>
    %c0_3 = arith.constant 0 : index
    %c0_4 = arith.constant 0 : index
    %4 = vector.load %arg3[%c0_3, %c0_4] : memref<1x128xf32, #tpu.memory_space<vmem>>, vector<1x128xf32>
    %5 = vector.broadcast %4 : vector<1x128xf32> to vector<16x128xf32>
    %6 = arith.addf %3, %5 : vector<16x128xf32>
    %cst_5 = arith.constant 0.000000e+00 : f32
    %7 = vector.broadcast %cst_5 : f32 to vector<16x128xf32>
    %8 = arith.maximumf %6, %7 : vector<16x128xf32>
    %9 = arith.truncf %8 : vector<16x128xf32> to vector<16x128xbf16>
    %c0_6 = arith.constant 0 : index
    %c0_7 = arith.constant 0 : index
    %10 = vector.load %arg4[%c0_6, %c0_7] : memref<128x128xbf16, #tpu.memory_space<vmem>>, vector<128x128xbf16>
    %cst_8 = arith.constant dense<0.000000e+00> : vector<16x128xf32>
    %11 = tpu.matmul %9, %10, %cst_8 {dimension_numbers = #tpu.dot_dimension_numbers<[1], [0], [0], [1], [0, 0, 1, 1], [], []>} : vector<16x128xbf16>, vector<128x128xbf16>, vector<16x128xf32> -> vector<16x128xf32>
    %c0_9 = arith.constant 0 : index
    %c0_10 = arith.constant 0 : index
    %12 = vector.load %arg5[%c0_9, %c0_10] : memref<1x128xf32, #tpu.memory_space<vmem>>, vector<1x128xf32>
    %13 = vector.broadcast %12 : vector<1x128xf32> to vector<16x128xf32>
    %14 = arith.addf %11, %13 : vector<16x128xf32>
    %cst_11 = arith.constant 0.000000e+00 : f32
    %15 = vector.broadcast %cst_11 : f32 to vector<16x128xf32>
    %16 = arith.maximumf %14, %15 : vector<16x128xf32>
    %17 = arith.truncf %16 : vector<16x128xf32> to vector<16x128xbf16>
    %c0_12 = arith.constant 0 : index
    %c0_13 = arith.constant 0 : index
    %18 = vector.load %arg6[%c0_12, %c0_13] : memref<128x128xbf16, #tpu.memory_space<vmem>>, vector<128x128xbf16>
    %cst_14 = arith.constant dense<0.000000e+00> : vector<16x128xf32>
    %19 = tpu.matmul %17, %18, %cst_14 {dimension_numbers = #tpu.dot_dimension_numbers<[1], [0], [0], [1], [0, 0, 1, 1], [], []>} : vector<16x128xbf16>, vector<128x128xbf16>, vector<16x128xf32> -> vector<16x128xf32>
    %c0_15 = arith.constant 0 : index
    %c0_16 = arith.constant 0 : index
    %20 = vector.load %arg7[%c0_15, %c0_16] : memref<1x128xf32, #tpu.memory_space<vmem>>, vector<1x128xf32>
    %21 = vector.broadcast %20 : vector<1x128xf32> to vector<16x128xf32>
    %22 = arith.addf %19, %21 : vector<16x128xf32>
    %cst_17 = arith.constant 0.000000e+00 : f32
    %23 = vector.broadcast %cst_17 : f32 to vector<16x128xf32>
    %24 = arith.maximumf %22, %23 : vector<16x128xf32>
    %25 = arith.truncf %24 : vector<16x128xf32> to vector<16x128xbf16>
    %c0_18 = arith.constant 0 : index
    %c0_19 = arith.constant 0 : index
    %26 = vector.load %arg8[%c0_18, %c0_19] : memref<128x128xbf16, #tpu.memory_space<vmem>>, vector<128x128xbf16>
    %cst_20 = arith.constant dense<0.000000e+00> : vector<16x128xf32>
    %27 = tpu.matmul %25, %26, %cst_20 {dimension_numbers = #tpu.dot_dimension_numbers<[1], [0], [0], [1], [0, 0, 1, 1], [], []>} : vector<16x128xbf16>, vector<128x128xbf16>, vector<16x128xf32> -> vector<16x128xf32>
    %c0_21 = arith.constant 0 : index
    %c0_22 = arith.constant 0 : index
    %28 = vector.load %arg9[%c0_21, %c0_22] : memref<1x128xf32, #tpu.memory_space<vmem>>, vector<1x128xf32>
    %29 = vector.broadcast %28 : vector<1x128xf32> to vector<16x128xf32>
    %30 = arith.addf %27, %29 : vector<16x128xf32>
    %c0_23 = arith.constant 0 : index
    %c0_24 = arith.constant 0 : index
    %31 = vector.load %arg10[%c0_23, %c0_24] : memref<16x128xf32, #tpu.memory_space<vmem>>, vector<16x128xf32>
    tpu.vector_store %arg10[%c0_23, %c0_24], %30 {strides = array<i32>} : memref<16x128xf32, #tpu.memory_space<vmem>>, vector<16x128xf32>,
    return
  }
  func.func @transform_0(%arg0: i32) -> (i32, i32) {
    %c0_i32 = arith.constant 0 : i32
    %c0_i32_0 = arith.constant 0 : i32
    return %arg0, %c0_i32 : i32, i32
  }
  func.func @transform_1(%arg0: i32) -> (i32, i32) {
    %c0_i32 = arith.constant 0 : i32
    %c0_i32_0 = arith.constant 0 : i32
    %c0_i32_1 = arith.constant 0 : i32
    return %c0_i32, %c0_i32_0 : i32, i32
  }
  func.func @transform_2(%arg0: i32) -> (i32, i32) {
    %c0_i32 = arith.constant 0 : i32
    %c0_i32_0 = arith.constant 0 : i32
    %c0_i32_1 = arith.constant 0 : i32
    return %c0_i32, %c0_i32_0 : i32, i32
  }
  func.func @transform_3(%arg0: i32) -> (i32, i32) {
    %c0_i32 = arith.constant 0 : i32
    %c0_i32_0 = arith.constant 0 : i32
    %c0_i32_1 = arith.constant 0 : i32
    return %c0_i32, %c0_i32_0 : i32, i32
  }
  func.func @transform_4(%arg0: i32) -> (i32, i32) {
    %c0_i32 = arith.constant 0 : i32
    %c0_i32_0 = arith.constant 0 : i32
    %c0_i32_1 = arith.constant 0 : i32
    return %c0_i32, %c0_i32_0 : i32, i32
  }
  func.func @transform_5(%arg0: i32) -> (i32, i32) {
    %c0_i32 = arith.constant 0 : i32
    %c0_i32_0 = arith.constant 0 : i32
    %c0_i32_1 = arith.constant 0 : i32
    return %c0_i32, %c0_i32_0 : i32, i32
  }
  func.func @transform_6(%arg0: i32) -> (i32, i32) {
    %c0_i32 = arith.constant 0 : i32
    %c0_i32_0 = arith.constant 0 : i32
    %c0_i32_1 = arith.constant 0 : i32
    return %c0_i32, %c0_i32_0 : i32, i32
  }
  func.func @transform_7(%arg0: i32) -> (i32, i32) {
    %c0_i32 = arith.constant 0 : i32
    %c0_i32_0 = arith.constant 0 : i32
    %c0_i32_1 = arith.constant 0 : i32
    return %c0_i32, %c0_i32_0 : i32, i32
  }
  func.func @transform_8(%arg0: i32) -> (i32, i32) {
    %c0_i32 = arith.constant 0 : i32
    %c0_i32_0 = arith.constant 0 : i32
    %c0_i32_1 = arith.constant 0 : i32
    return %c0_i32, %c0_i32_0 : i32, i32
  }
  func.func @transform_9(%arg0: i32) -> (i32, i32) {
    %c0_i32 = arith.constant 0 : i32
    %c0_i32_0 = arith.constant 0 : i32
    return %arg0, %c0_i32 : i32, i32
  }
}

</mosaic_0001>

<llo_original>
// kernel: battlenet_forward.1
$region0: #{battlenet_forward.1}
  #allocation0 [shape = 'u32[]', space=smem, size = 0x4, offset = 0x4, fixed_abs, tag = 'smem constant byte address 0x4 - core index']
  #allocation1 [shape = 'u32[144,128]{1,0:T(1,128)}', space=vmem, size = 0x12000, scoped, tag = 'internal scratch']
  %s0 = inlined_call_operand.vmem [shape: f32[16,16], index: 0, kind: input, shape index: {}]
  %s1 = inlined_call_operand.vmem [shape: bf16[16,128], index: 1, kind: input, shape index: {}]
  %s2 = inlined_call_operand.vmem [shape: f32[1,128], index: 2, kind: input, shape index: {}]
  %s3 = inlined_call_operand.hbm [shape: bf16[128,128], index: 3, kind: input, shape index: {}]
  %s4 = inlined_call_operand.vmem [shape: f32[1,128], index: 4, kind: input, shape index: {}]
  %s5 = inlined_call_operand.hbm [shape: bf16[128,128], index: 5, kind: input, shape index: {}]
  %s6 = inlined_call_operand.vmem [shape: f32[1,128], index: 6, kind: input, shape index: {}]
  %s7 = inlined_call_operand.hbm [shape: bf16[128,128], index: 7, kind: input, shape index: {}]
  %s8 = inlined_call_operand.vmem [shape: f32[1,128], index: 8, kind: input, shape index: {}]
  %s9 = inlined_call_operand.vmem [shape: f32[16,128], index: 9, kind: output, shape index: {}]
  %s10 = sld [smem:[#allocation0]]
  $region58: #{battlenet_forward.1} parent=0
    _
  %s12 = ssub.s32 1, %s10
  %s13 = scalar_select 0, %s12, %s10
  $region1: #{battlenet_forward.1} parent=0
    #allocation2 [shape = 'u8[32768]{0}', space=vmem, size = 0x8000, scoped, tag = 'input window, operand 3, single buffered']
    #allocation3 [shape = 's32[1]{0}', space=sflag, size = 0x4, scoped, tag = 'scoped memory for battlenet_forward.1']
    #allocation4 [shape = 'u8[32768]{0}', space=vmem, size = 0x8000, scoped, tag = 'input window, operand 5, single buffered']
    #allocation5 [shape = 's32[1]{0}', space=sflag, size = 0x4, scoped, tag = 'scoped memory for battlenet_forward.1']
    #allocation6 [shape = 'u8[32768]{0}', space=vmem, size = 0x8000, scoped, tag = 'input window, operand 7, single buffered']
    %14 = vsyncpa [#allocation3], 0
    %15 = vsyncpa [#allocation5], 0
    // Predicated region
    $region2: #{battlenet_forward.1} parent=1 // pred_check
      _
    $region3: #{battlenet_forward.1} parent=1 // pred_check_branch
      %17 = sbr.rel (0) target = $region5
    $region4: #{battlenet_forward.1} parent=1 // pred_region
      _
    $region5: #{battlenet_forward.1} parent=1 // pred_fallthru
      _
    // Predicated region
    $region6: #{battlenet_forward.1} parent=1 // pred_check
      _
    $region7: #{battlenet_forward.1} parent=1 // pred_check_branch
      %19 = sbr.rel (0) target = $region9
    $region8: #{battlenet_forward.1} parent=1 // pred_region
      _
    $region9: #{battlenet_forward.1} parent=1 // pred_fallthru
      _
    // Predicated region
    $region10: #{battlenet_forward.1} parent=1 // pred_check
      _
    $region11: #{battlenet_forward.1} parent=1 // pred_check_branch
      %21 = sbr.rel (0) target = $region13
    $region12: #{battlenet_forward.1} parent=1 // pred_region
      _
    $region13: #{battlenet_forward.1} parent=1 // pred_fallthru
      _
    // Predicated region
    $region14: #{battlenet_forward.1} parent=1 // pred_check
      _
    $region15: #{battlenet_forward.1} parent=1 // pred_check_branch
      %23 = sbr.rel (0) target = $region17
    $region16: #{battlenet_forward.1} parent=1 // pred_region
      %s25 = ssub.s32 1024, 1024
      %26 = vsyncadd [#allocation3], %s25
      %s27 = sshll.u32 [#allocation2], 4
      %s28 = int_to_ptr.vmem [resolvable:$true] %s27
      %33 = dma.hbm_to_vmem [thread:$0]  %s3, 1024, %s28, [#allocation3], 64, 64, 4
    $region17: #{battlenet_forward.1} parent=1 // pred_fallthru
      _
    // Predicated region
    $region18: #{battlenet_forward.1} parent=1 // pred_check
      _
    $region19: #{battlenet_forward.1} parent=1 // pred_check_branch
      %35 = sbr.rel (0) target = $region21
    $region20: #{battlenet_forward.1} parent=1 // pred_region
      _
    $region21: #{battlenet_forward.1} parent=1 // pred_fallthru
      _
    // Predicated region
    $region22: #{battlenet_forward.1} parent=1 // pred_check
      _
    $region23: #{battlenet_forward.1} parent=1 // pred_check_branch
      %37 = sbr.rel (0) target = $region25
    $region24: #{battlenet_forward.1} parent=1 // pred_region
      %s39 = ssub.s32 1024, 1024
      %40 = vsyncadd [#allocation5], %s39
      %s41 = sshll.u32 [#allocation4], 4
      %s42 = int_to_ptr.vmem [resolvable:$true] %s41
      %47 = dma.hbm_to_vmem [thread:$0]  %s5, 1024, %s42, [#allocation5], 64, 64, 4
    $region25: #{battlenet_forward.1} parent=1 // pred_fallthru
      _
    // Predicated region
    $region26: #{battlenet_forward.1} parent=1 // pred_check
      _
    $region27: #{battlenet_forward.1} parent=1 // pred_check_branch
      %49 = sbr.rel (0) target = $region29
    $region28: #{battlenet_forward.1} parent=1 // pred_region
      _
    $region29: #{battlenet_forward.1} parent=1 // pred_fallthru
      _
    // Predicated region
    $region30: #{battlenet_forward.1} parent=1 // pred_check
      _
    $region31: #{battlenet_forward.1} parent=1 // pred_check_branch
      %51 = sbr.rel (0) target = $region33
    $region32: #{battlenet_forward.1} parent=1 // pred_region
      %s53 = ssub.s32 1024, 1024
      %54 = vsyncadd [#allocation5], %s53
      %s55 = sshll.u32 [#allocation6], 4
      %s56 = int_to_ptr.vmem [resolvable:$true] %s55
      %61 = dma.hbm_to_vmem [thread:$0]  %s7, 1024, %s56, [#allocation5], 64, 64, 4
    $region33: #{battlenet_forward.1} parent=1 // pred_fallthru
      _
    // Predicated region
    $region34: #{battlenet_forward.1} parent=1 // pred_check
      _
    $region35: #{battlenet_forward.1} parent=1 // pred_check_branch
      %63 = sbr.rel (0) target = $region37
    $region36: #{battlenet_forward.1} parent=1 // pred_region
      _
    $region37: #{battlenet_forward.1} parent=1 // pred_fallthru
      _
    // Predicated region
    $region38: #{battlenet_forward.1} parent=1 // pred_check
      _
    $region39: #{battlenet_forward.1} parent=1 // pred_check_branch
      %65 = sbr.rel (0) target = $region41
    $region40: #{battlenet_forward.1} parent=1 // pred_region
      %66 = dma.done [#allocation3], 1024
    $region41: #{battlenet_forward.1} parent=1 // pred_fallthru
      _
    // Predicated region
    $region42: #{battlenet_forward.1} parent=1 // pred_check
      _
    $region43: #{battlenet_forward.1} parent=1 // pred_check_branch
      %68 = sbr.rel (0) target = $region45
    $region44: #{battlenet_forward.1} parent=1 // pred_region
      %69 = dma.done [#allocation5], 1024
    $region45: #{battlenet_forward.1} parent=1 // pred_fallthru
      _
    // Predicated region
    $region46: #{battlenet_forward.1} parent=1 // pred_check
      _
    $region47: #{battlenet_forward.1} parent=1 // pred_check_branch
      %71 = sbr.rel (0) target = $region49
    $region48: #{battlenet_forward.1} parent=1 // pred_region
      %72 = dma.done [#allocation5], 1024
    $region49: #{battlenet_forward.1} parent=1 // pred_fallthru
      _
    %v74 = vld [vmem:[%s0] sm:$0xff]
    %v75 = vld [vmem:[%s0 + $0x8] sm:$0xff]
    %v76 = vpack.c.bf16 %v75, %v74
    %v77 = vld [vmem:[%s1] sm:$0xf]
    %v78 = vld [vmem:[%s1 + $0x4] sm:$0xf]
    %v79 = vld [vmem:[%s2] sm:$0x1]
    %v81 = vlaneseq
    %v82 = vshrl.u32 %v81, 7
    %v83 = vsub.s32 0, %v82
    %v84 = vrot.slane %v79, %v83
    %v88 = vunpack.c.l.b16 %v77
    %v89 = vunpack.c.l.b16 %v78
    %v90 = vpack.c.b16 %v89, %v88
    %vm92 = vcmask 130048
    %v94 = vsel %vm92, %v76, 0
    %96 = vmatprep.subr.bf16.mxu0 0
    %97 = vmatpush1.bf16.msra.mxu0 0
    %98 = vmatprep.subr.bf16.mxu0 0
    %99 = vmatpush1.bf16.msra.mxu0 0
    %100 = vmatprep.subr.bf16.mxu0 0
    %101 = vmatpush1.bf16.msra.mxu0 0
    %102 = vmatprep.subr.bf16.mxu0 0
    %103 = vmatpush1.bf16.msra.mxu0 0
    %104 = vmatprep.subr.bf16.mxu0 0
    %105 = vmatpush1.bf16.msra.mxu0 0
    %106 = vmatprep.subr.bf16.mxu0 0
    %107 = vmatpush1.bf16.msra.mxu0 0
    %108 = vmatprep.subr.bf16.mxu0 0
    %109 = vmatpush1.bf16.msra.mxu0 0
    %110 = vmatprep.subr.bf16.mxu0 0
    %111 = vmatpush1.bf16.msra.mxu0 %v90
    %112 = vmatprep.subr.bf16.mxu0 0
    %113 = vmatpush2.bf16.msra.mxu0 0
    %114 = vmatprep.subr.bf16.mxu0 0
    %115 = vmatpush2.bf16.msra.mxu0 0
    %116 = vmatprep.subr.bf16.mxu0 0
    %117 = vmatpush2.bf16.msra.mxu0 0
    %118 = vmatprep.subr.bf16.mxu0 0
    %119 = vmatpush2.bf16.msra.mxu0 0
    %120 = vmatprep.subr.bf16.mxu0 0
    %121 = vmatpush2.bf16.msra.mxu0 0
    %122 = vmatprep.subr.bf16.mxu0 0
    %123 = vmatpush2.bf16.msra.mxu0 0
    %124 = vmatprep.subr.bf16.mxu0 0
    %125 = vmatpush2.bf16.msra.mxu0 0
    %126 = vmatprep.subr.bf16.mxu0 0
    %127 = vmatpush2.bf16.msra.mxu0 0
    %128 = vmatprep.mubr.bf16.mxu0 0
    %129 = vmatmul.mubr.bf16.gmra.mxu0 %v94
    %v130 = vpop.f32.mrf.mxu0
    %v131 = vadd.f32 %v84, %v130
    %v132 = vpop.f32.mrf.mxu0
    %v133 = vpop.f32.mrf.mxu0
    %v134 = vadd.f32 %v84, %v133
    %v135 = vpop.f32.mrf.mxu0
    %136 = vdwg.mxu0
    %v137 = vmax.f32 %v131, 0.0
    %v138 = vmax.f32 %v134, 0.0
    %v139 = vpack.c.bf16 %v138, %v137
    %v140 = vld [vmem:[#allocation2] sm:$0xf]
    %v141 = vld [vmem:[#allocation2 + $0x4] sm:$0xf]
    %v142 = vld [vmem:[#allocation2 + $0x8] sm:$0xf]
    %v143 = vld [vmem:[#allocation2 + $0xc] sm:$0xf]
    %v144 = vld [vmem:[#allocation2 + $0x10] sm:$0xf]
    %v145 = vld [vmem:[#allocation2 + $0x14] sm:$0xf]
    %v146 = vld [vmem:[#allocation2 + $0x18] sm:$0xf]
    %v147 = vld [vmem:[#allocation2 + $0x1c] sm:$0xf]
    %v148 = vld [vmem:[#allocation2 + $0x20] sm:$0xf]
    %v149 = vld [vmem:[#allocation2 + $0x24] sm:$0xf]
    %v150 = vld [vmem:[#allocation2 + $0x28] sm:$0xf]
    %v151 = vld [vmem:[#allocation2 + $0x2c] sm:$0xf]
    %v152 = vld [vmem:[#allocation2 + $0x30] sm:$0xf]
    %v153 = vld [vmem:[#allocation2 + $0x34] sm:$0xf]
    %v154 = vld [vmem:[#allocation2 + $0x38] sm:$0xf]
    %v155 = vld [vmem:[#allocation2 + $0x3c] sm:$0xf]
    %v156 = vld [vmem:[%s4] sm:$0x1]
    %v158 = vlaneseq
    %v159 = vshrl.u32 %v158, 7
    %v160 = vsub.s32 0, %v159
    %v161 = vrot.slane %v156, %v160
    %v179 = vunpack.c.l.b16 %v140
    %v180 = vunpack.c.l.b16 %v141
    %v181 = vunpack.c.l.b16 %v142
    %v182 = vunpack.c.l.b16 %v143
    %v183 = vunpack.c.l.b16 %v144
    %v184 = vunpack.c.l.b16 %v145
    %v185 = vunpack.c.l.b16 %v146
    %v186 = vunpack.c.l.b16 %v147
    %v187 = vunpack.c.l.b16 %v148
    %v188 = vunpack.c.l.b16 %v149
    %v189 = vunpack.c.l.b16 %v150
    %v190 = vunpack.c.l.b16 %v151
    %v191 = vunpack.c.l.b16 %v152
    %v192 = vunpack.c.l.b16 %v153
    %v193 = vunpack.c.l.b16 %v154
    %v194 = vunpack.c.l.b16 %v155
    %v195 = vpack.c.b16 %v180, %v179
    %v196 = vpack.c.b16 %v182, %v181
    %v197 = vpack.c.b16 %v184, %v183
    %v198 = vpack.c.b16 %v186, %v185
    %v199 = vpack.c.b16 %v188, %v187
    %v200 = vpack.c.b16 %v190, %v189
    %v201 = vpack.c.b16 %v192, %v191
    %v202 = vpack.c.b16 %v194, %v193
    %211 = vmatprep.subr.bf16.mxu0 0
    %212 = vmatpush1.bf16.msra.mxu0 %v202
    %213 = vmatprep.subr.bf16.mxu0 0
    %214 = vmatpush1.bf16.msra.mxu0 %v201
    %215 = vmatprep.subr.bf16.mxu0 0
    %216 = vmatpush1.bf16.msra.mxu0 %v200
    %217 = vmatprep.subr.bf16.mxu0 0
    %218 = vmatpush1.bf16.msra.mxu0 %v199
    %219 = vmatprep.subr.bf16.mxu0 0
    %220 = vmatpush1.bf16.msra.mxu0 %v198
    %221 = vmatprep.subr.bf16.mxu0 0
    %222 = vmatpush1.bf16.msra.mxu0 %v197
    %223 = vmatprep.subr.bf16.mxu0 0
    %224 = vmatpush1.bf16.msra.mxu0 %v196
    %225 = vmatprep.subr.bf16.mxu0 0
    %226 = vmatpush1.bf16.msra.mxu0 %v195
    %227 = vmatprep.subr.bf16.mxu0 0
    %228 = vmatpush2.bf16.msra.mxu0 0
    %229 = vmatprep.subr.bf16.mxu0 0
    %230 = vmatpush2.bf16.msra.mxu0 0
    %231 = vmatprep.subr.bf16.mxu0 0
    %232 = vmatpush2.bf16.msra.mxu0 0
    %233 = vmatprep.subr.bf16.mxu0 0
    %234 = vmatpush2.bf16.msra.mxu0 0
    %235 = vmatprep.subr.bf16.mxu0 0
    %236 = vmatpush2.bf16.msra.mxu0 0
    %237 = vmatprep.subr.bf16.mxu0 0
    %238 = vmatpush2.bf16.msra.mxu0 0
    %239 = vmatprep.subr.bf16.mxu0 0
    %240 = vmatpush2.bf16.msra.mxu0 0
    %241 = vmatprep.subr.bf16.mxu0 0
    %242 = vmatpush2.bf16.msra.mxu0 0
    %243 = vmatprep.mubr.bf16.mxu0 0
    %244 = vmatmul.mubr.bf16.gmra.mxu0 %v139
    %v245 = vpop.f32.mrf.mxu0
    %v246 = vadd.f32 %v161, %v245
    %v247 = vpop.f32.mrf.mxu0
    %v248 = vpop.f32.mrf.mxu0
    %v249 = vadd.f32 %v161, %v248
    %v250 = vpop.f32.mrf.mxu0
    %251 = vdwg.mxu0
    %v252 = vmax.f32 %v246, 0.0
    %v253 = vmax.f32 %v249, 0.0
    %v254 = vpack.c.bf16 %v253, %v252
    %v255 = vld [vmem:[#allocation4] sm:$0xf]
    %v256 = vld [vmem:[#allocation4 + $0x4] sm:$0xf]
    %v257 = vld [vmem:[#allocation4 + $0x8] sm:$0xf]
    %v258 = vld [vmem:[#allocation4 + $0xc] sm:$0xf]
    %v259 = vld [vmem:[#allocation4 + $0x10] sm:$0xf]
    %v260 = vld [vmem:[#allocation4 + $0x14] sm:$0xf]
    %v261 = vld [vmem:[#allocation4 + $0x18] sm:$0xf]
    %v262 = vld [vmem:[#allocation4 + $0x1c] sm:$0xf]
    %v263 = vld [vmem:[#allocation4 + $0x20] sm:$0xf]
    %v264 = vld [vmem:[#allocation4 + $0x24] sm:$0xf]
    %v265 = vld [vmem:[#allocation4 + $0x28] sm:$0xf]
    %v266 = vld [vmem:[#allocation4 + $0x2c] sm:$0xf]
    %v267 = vld [vmem:[#allocation4 + $0x30] sm:$0xf]
    %v268 = vld [vmem:[#allocation4 + $0x34] sm:$0xf]
    %v269 = vld [vmem:[#allocation4 + $0x38] sm:$0xf]
    %v270 = vld [vmem:[#allocation4 + $0x3c] sm:$0xf]
    %v271 = vld [vmem:[%s6] sm:$0x1]
    %v273 = vlaneseq
    %v274 = vshrl.u32 %v273, 7
    %v275 = vsub.s32 0, %v274
    %v276 = vrot.slane %v271, %v275
    %v294 = vunpack.c.l.b16 %v255
    %v295 = vunpack.c.l.b16 %v256
    %v296 = vunpack.c.l.b16 %v257
    %v297 = vunpack.c.l.b16 %v258
    %v298 = vunpack.c.l.b16 %v259
    %v299 = vunpack.c.l.b16 %v260
    %v300 = vunpack.c.l.b16 %v261
    %v301 = vunpack.c.l.b16 %v262
    %v302 = vunpack.c.l.b16 %v263
    %v303 = vunpack.c.l.b16 %v264
    %v304 = vunpack.c.l.b16 %v265
    %v305 = vunpack.c.l.b16 %v266
    %v306 = vunpack.c.l.b16 %v267
    %v307 = vunpack.c.l.b16 %v268
    %v308 = vunpack.c.l.b16 %v269
    %v309 = vunpack.c.l.b16 %v270
    %v310 = vpack.c.b16 %v295, %v294
    %v311 = vpack.c.b16 %v297, %v296
    %v312 = vpack.c.b16 %v299, %v298
    %v313 = vpack.c.b16 %v301, %v300
    %v314 = vpack.c.b16 %v303, %v302
    %v315 = vpack.c.b16 %v305, %v304
    %v316 = vpack.c.b16 %v307, %v306
    %v317 = vpack.c.b16 %v309, %v308
    %326 = vmatprep.subr.bf16.mxu0 0
    %327 = vmatpush1.bf16.msra.mxu0 %v317
    %328 = vmatprep.subr.bf16.mxu0 0
    %329 = vmatpush1.bf16.msra.mxu0 %v316
    %330 = vmatprep.subr.bf16.mxu0 0
    %331 = vmatpush1.bf16.msra.mxu0 %v315
    %332 = vmatprep.subr.bf16.mxu0 0
    %333 = vmatpush1.bf16.msra.mxu0 %v314
    %334 = vmatprep.subr.bf16.mxu0 0
    %335 = vmatpush1.bf16.msra.mxu0 %v313
    %336 = vmatprep.subr.bf16.mxu0 0
    %337 = vmatpush1.bf16.msra.mxu0 %v312
    %338 = vmatprep.subr.bf16.mxu0 0
    %339 = vmatpush1.bf16.msra.mxu0 %v311
    %340 = vmatprep.subr.bf16.mxu0 0
    %341 = vmatpush1.bf16.msra.mxu0 %v310
    %342 = vmatprep.subr.bf16.mxu0 0
    %343 = vmatpush2.bf16.msra.mxu0 0
    %344 = vmatprep.subr.bf16.mxu0 0
    %345 = vmatpush2.bf16.msra.mxu0 0
    %346 = vmatprep.subr.bf16.mxu0 0
    %347 = vmatpush2.bf16.msra.mxu0 0
    %348 = vmatprep.subr.bf16.mxu0 0
    %349 = vmatpush2.bf16.msra.mxu0 0
    %350 = vmatprep.subr.bf16.mxu0 0
    %351 = vmatpush2.bf16.msra.mxu0 0
    %352 = vmatprep.subr.bf16.mxu0 0
    %353 = vmatpush2.bf16.msra.mxu0 0
    %354 = vmatprep.subr.bf16.mxu0 0
    %355 = vmatpush2.bf16.msra.mxu0 0
    %356 = vmatprep.subr.bf16.mxu0 0
    %357 = vmatpush2.bf16.msra.mxu0 0
    %358 = vmatprep.mubr.bf16.mxu0 0
    %359 = vmatmul.mubr.bf16.gmra.mxu0 %v254
    %v360 = vpop.f32.mrf.mxu0
    %v361 = vadd.f32 %v276, %v360
    %v362 = vpop.f32.mrf.mxu0
    %v363 = vpop.f32.mrf.mxu0
    %v364 = vadd.f32 %v276, %v363
    %v365 = vpop.f32.mrf.mxu0
    %366 = vdwg.mxu0
    %v367 = vmax.f32 %v361, 0.0
    %v368 = vmax.f32 %v364, 0.0
    %v369 = vpack.c.bf16 %v368, %v367
    %v370 = vld [vmem:[#allocation6] sm:$0xf]
    %v371 = vld [vmem:[#allocation6 + $0x4] sm:$0xf]
    %v372 = vld [vmem:[#allocation6 + $0x8] sm:$0xf]
    %v373 = vld [vmem:[#allocation6 + $0xc] sm:$0xf]
    %v374 = vld [vmem:[#allocation6 + $0x10] sm:$0xf]
    %v375 = vld [vmem:[#allocation6 + $0x14] sm:$0xf]
    %v376 = vld [vmem:[#allocation6 + $0x18] sm:$0xf]
    %v377 = vld [vmem:[#allocation6 + $0x1c] sm:$0xf]
    %v378 = vld [vmem:[#allocation6 + $0x20] sm:$0xf]
    %v379 = vld [vmem:[#allocation6 + $0x24] sm:$0xf]
    %v380 = vld [vmem:[#allocation6 + $0x28] sm:$0xf]
    %v381 = vld [vmem:[#allocation6 + $0x2c] sm:$0xf]
    %v382 = vld [vmem:[#allocation6 + $0x30] sm:$0xf]
    %v383 = vld [vmem:[#allocation6 + $0x34] sm:$0xf]
    %v384 = vld [vmem:[#allocation6 + $0x38] sm:$0xf]
    %v385 = vld [vmem:[#allocation6 + $0x3c] sm:$0xf]
    %v386 = vld [vmem:[%s8] sm:$0x1]
    %v388 = vlaneseq
    %v389 = vshrl.u32 %v388, 7
    %v390 = vsub.s32 0, %v389
    %v391 = vrot.slane %v386, %v390
    %v409 = vunpack.c.l.b16 %v370
    %v410 = vunpack.c.l.b16 %v371
    %v411 = vunpack.c.l.b16 %v372
    %v412 = vunpack.c.l.b16 %v373
    %v413 = vunpack.c.l.b16 %v374
    %v414 = vunpack.c.l.b16 %v375
    %v415 = vunpack.c.l.b16 %v376
    %v416 = vunpack.c.l.b16 %v377
    %v417 = vunpack.c.l.b16 %v378
    %v418 = vunpack.c.l.b16 %v379
    %v419 = vunpack.c.l.b16 %v380
    %v420 = vunpack.c.l.b16 %v381
    %v421 = vunpack.c.l.b16 %v382
    %v422 = vunpack.c.l.b16 %v383
    %v423 = vunpack.c.l.b16 %v384
    %v424 = vunpack.c.l.b16 %v385
    %v425 = vpack.c.b16 %v410, %v409
    %v426 = vpack.c.b16 %v412, %v411
    %v427 = vpack.c.b16 %v414, %v413
    %v428 = vpack.c.b16 %v416, %v415
    %v429 = vpack.c.b16 %v418, %v417
    %v430 = vpack.c.b16 %v420, %v419
    %v431 = vpack.c.b16 %v422, %v421
    %v432 = vpack.c.b16 %v424, %v423
    %441 = vmatprep.subr.bf16.mxu0 0
    %442 = vmatpush1.bf16.msra.mxu0 %v432
    %443 = vmatprep.subr.bf16.mxu0 0
    %444 = vmatpush1.bf16.msra.mxu0 %v431
    %445 = vmatprep.subr.bf16.mxu0 0
    %446 = vmatpush1.bf16.msra.mxu0 %v430
    %447 = vmatprep.subr.bf16.mxu0 0
    %448 = vmatpush1.bf16.msra.mxu0 %v429
    %449 = vmatprep.subr.bf16.mxu0 0
    %450 = vmatpush1.bf16.msra.mxu0 %v428
    %451 = vmatprep.subr.bf16.mxu0 0
    %452 = vmatpush1.bf16.msra.mxu0 %v427
    %453 = vmatprep.subr.bf16.mxu0 0
    %454 = vmatpush1.bf16.msra.mxu0 %v426
    %455 = vmatprep.subr.bf16.mxu0 0
    %456 = vmatpush1.bf16.msra.mxu0 %v425
    %457 = vmatprep.subr.bf16.mxu0 0
    %458 = vmatpush2.bf16.msra.mxu0 0
    %459 = vmatprep.subr.bf16.mxu0 0
    %460 = vmatpush2.bf16.msra.mxu0 0
    %461 = vmatprep.subr.bf16.mxu0 0
    %462 = vmatpush2.bf16.msra.mxu0 0
    %463 = vmatprep.subr.bf16.mxu0 0
    %464 = vmatpush2.bf16.msra.mxu0 0
    %465 = vmatprep.subr.bf16.mxu0 0
    %466 = vmatpush2.bf16.msra.mxu0 0
    %467 = vmatprep.subr.bf16.mxu0 0
    %468 = vmatpush2.bf16.msra.mxu0 0
    %469 = vmatprep.subr.bf16.mxu0 0
    %470 = vmatpush2.bf16.msra.mxu0 0
    %471 = vmatprep.subr.bf16.mxu0 0
    %472 = vmatpush2.bf16.msra.mxu0 0
    %473 = vmatprep.mubr.bf16.mxu0 0
    %474 = vmatmul.mubr.bf16.gmra.mxu0 %v369
    %v475 = vpop.f32.mrf.mxu0
    %v476 = vadd.f32 %v391, %v475
    %v477 = vpop.f32.mrf.mxu0
    %v478 = vpop.f32.mrf.mxu0
    %v479 = vadd.f32 %v391, %v478
    %v480 = vpop.f32.mrf.mxu0
    %481 = vdwg.mxu0
    %482 = vst [vmem:[%s9] sm:$0xff] %v476
    %483 = vst [vmem:[%s9 + $0x8] sm:$0xff] %v479
    // Predicated region
    $region50: #{battlenet_forward.1} parent=1 // pred_check
      _
    $region51: #{battlenet_forward.1} parent=1 // pred_check_branch
      %485 = sbr.rel (0) target = $region53
    $region52: #{battlenet_forward.1} parent=1 // pred_region
      _
    $region53: #{battlenet_forward.1} parent=1 // pred_fallthru
      _
    // Predicated region
    $region54: #{battlenet_forward.1} parent=1 // pred_check
      _
    $region55: #{battlenet_forward.1} parent=1 // pred_check_branch
      %487 = sbr.rel (0) target = $region57
    $region56: #{battlenet_forward.1} parent=1 // pred_region
      _
    $region57: #{battlenet_forward.1} parent=1 // pred_fallthru
      _
    %488 = vsyncpa [#allocation3], 1
    %489 = vsyncpa [#allocation5], 1

</llo_original>
